<compile_context>
chip_gen: v7x
topology: tpu7x:2x2x1
jax: 0.10.0
libtpu: 0.0.40
codegen_flags: <defaults>
</compile_context>

<pallas_src>
import functools

import jax
import jax.numpy as jnp
from jax.experimental import pallas as pl
from jax.experimental.pallas import tpu as pltpu


def _round_up(x, m):
    return ((x + m - 1) // m) * m


def _dense_relu_kernel(x_ref, w_ref, b_ref, scale_ref, shift_ref, o_ref, acc_ref,
                       *, negative_slope):
    """o = leaky_relu(x @ w + b) * scale + shift, accumulated over the K axis."""
    @pl.when(pl.program_id(2) == 0)
    def _():
        acc_ref[...] = jnp.zeros_like(acc_ref)

    acc_ref[...] += jnp.dot(x_ref[...], w_ref[...],
                            preferred_element_type=jnp.float32)

    @pl.when(pl.program_id(2) == pl.num_programs(2) - 1)
    def _():
        h = acc_ref[...] + b_ref[...]                    # (tm, tn) + (1, tn)
        h = jnp.where(h >= 0.0, h, negative_slope * h)   # LeakyReLU
        o_ref[...] = (h * scale_ref[...] + shift_ref[...]).astype(o_ref.dtype)


def _affine_kernel(h_ref, scale_ref, shift_ref, o_ref):
    """o = h * scale + shift (per-feature affine, lane-dense blocks)."""
    o_ref[...] = (h_ref[...] * scale_ref[...] + shift_ref[...]).astype(o_ref.dtype)


def _fused_linear_lrelu_affine(xp, wtp, bp, scale_p, shift_p, *, tm, tn, tk,
                               negative_slope, out_dtype):
    Mp, Kp = xp.shape
    Np = wtp.shape[1]
    grid = (Mp // tm, Np // tn, Kp // tk)
    kernel = functools.partial(_dense_relu_kernel, negative_slope=negative_slope)
    return pl.pallas_call(
        kernel,
        out_shape=jax.ShapeDtypeStruct((Mp, Np), out_dtype),
        grid_spec=pltpu.PrefetchScalarGridSpec(
            num_scalar_prefetch=0,
            grid=grid,
            in_specs=[
                pl.BlockSpec((tm, tk), lambda i, j, k: (i, k)),
                pl.BlockSpec((tk, tn), lambda i, j, k: (k, j)),
                pl.BlockSpec((1, tn), lambda i, j, k: (0, j)),
                pl.BlockSpec((1, tn), lambda i, j, k: (0, j)),
                pl.BlockSpec((1, tn), lambda i, j, k: (0, j)),
            ],
            out_specs=pl.BlockSpec((tm, tn), lambda i, j, k: (i, j)),
            scratch_shapes=[pltpu.VMEM((tm, tn), jnp.float32)],
        ),
        compiler_params=pltpu.CompilerParams(
            dimension_semantics=("parallel", "parallel", "arbitrary"),
        ),
    )(xp, wtp, bp, scale_p, shift_p)


def _apply_affine(hp, scale_p, shift_p, *, tm, tn, out_dtype):
    Mp, Np = hp.shape
    grid = (Mp // tm, Np // tn)
    return pl.pallas_call(
        _affine_kernel,
        out_shape=jax.ShapeDtypeStruct((Mp, Np), out_dtype),
        grid_spec=pltpu.PrefetchScalarGridSpec(
            num_scalar_prefetch=0,
            grid=grid,
            in_specs=[
                pl.BlockSpec((tm, tn), lambda i, j: (i, j)),
                pl.BlockSpec((1, tn), lambda i, j: (0, j)),
                pl.BlockSpec((1, tn), lambda i, j: (0, j)),
            ],
            out_specs=pl.BlockSpec((tm, tn), lambda i, j: (i, j)),
        ),
        compiler_params=pltpu.CompilerParams(
            dimension_semantics=("parallel", "parallel"),
        ),
    )(hp, scale_p, shift_p)


def dense_relu_forward(x, weight, bias, gamma, beta,
                       running_mean=None, running_var=None, *,
                       eps=1e-5, negative_slope=0.01, training=True,
                       tm=256, tn=256, tk=256):
    """Pallas equivalent of DenseReLU.forward for 2-D (B, F) or 3-D (B, T, F) x."""
    orig_shape = x.shape
    in_dim = orig_shape[-1]
    out_dim = weight.shape[0]
    x2 = x.reshape(-1, in_dim)
    M, K = x2.shape
    N = out_dim

    # (8, 128)-aligned tiles, capped so 2x-buffered blocks fit all VMEM budgets.
    tm = min(tm, _round_up(M, 8))
    tn = min(tn, _round_up(N, 128))
    tk = min(tk, _round_up(K, 128))
    Mp, Kp, Np = _round_up(M, tm), _round_up(K, tk), _round_up(N, tn)

    f32 = jnp.float32
    xp = jnp.pad(x2.astype(f32), ((0, Mp - M), (0, Kp - K)))
    wtp = jnp.pad(weight.astype(f32).T, ((0, Kp - K), (0, Np - N)))
    bp = jnp.pad(bias.astype(f32)[None, :], ((0, 0), (0, Np - N)))

    if training:
        # Pass 1: h = leaky_relu(x @ W.T + b)  (identity affine epilogue).
        ones = jnp.ones((1, Np), f32)
        zeros = jnp.zeros((1, Np), f32)
        hp = _fused_linear_lrelu_affine(xp, wtp, bp, ones, zeros,
                                        tm=tm, tn=tn, tk=tk,
                                        negative_slope=negative_slope,
                                        out_dtype=f32)
        # Batch statistics over all non-feature positions (biased variance,
        # matching BatchNorm1d training mode).
        # TODO(synk): this tiny per-feature mean/var reduction stays in XLA; it
        # could be fused as a Pallas reduction over the M grid axis.
        h_valid = hp[:M, :N]
        mean = jnp.mean(h_valid, axis=0)
        var = jnp.var(h_valid, axis=0)
        scale = gamma.astype(f32) * jax.lax.rsqrt(var + eps)
        shift = beta.astype(f32) - mean * scale
        scale_p = jnp.pad(scale[None, :], ((0, 0), (0, Np - N)))
        shift_p = jnp.pad(shift[None, :], ((0, 0), (0, Np - N)))
        # TODO(synk): running_mean / running_var EMA update is module state
        # (not part of the forward output) and is intentionally not emulated.
        yp = _apply_affine(hp, scale_p, shift_p, tm=tm, tn=tn, out_dtype=x.dtype)
    else:
        # Eval mode: fold gamma/beta/running stats into one per-feature affine
        # fused straight into the matmul epilogue (single pallas_call).
        scale = gamma.astype(f32) * jax.lax.rsqrt(running_var.astype(f32) + eps)
        shift = beta.astype(f32) - running_mean.astype(f32) * scale
        scale_p = jnp.pad(scale[None, :], ((0, 0), (0, Np - N)))
        shift_p = jnp.pad(shift[None, :], ((0, 0), (0, Np - N)))
        yp = _fused_linear_lrelu_affine(xp, wtp, bp, scale_p, shift_p,
                                        tm=tm, tn=tn, tk=tk,
                                        negative_slope=negative_slope,
                                        out_dtype=x.dtype)

    return yp[:M, :N].reshape(orig_shape[:-1] + (out_dim,))


if __name__ == "__main__":
    key = jax.random.PRNGKey(0)
    B, T, in_dim, out_dim = 2, 8, 16, 32
    kx, kw, kb = jax.random.split(key, 3)
    x = jax.random.normal(kx, (B, T, in_dim), dtype=jnp.float32)
    weight = jax.random.normal(kw, (out_dim, in_dim), dtype=jnp.float32) * 0.1
    bias = jax.random.normal(kb, (out_dim,), dtype=jnp.float32) * 0.1
    gamma = jnp.ones((out_dim,), jnp.float32)
    beta = jnp.zeros((out_dim,), jnp.float32)
    running_mean = jnp.zeros((out_dim,), jnp.float32)
    running_var = jnp.ones((out_dim,), jnp.float32)

    # Training-mode forward (PyTorch default for a fresh module).
    y = dense_relu_forward(x, weight, bias, gamma, beta, training=True)
    y = jax.block_until_ready(y)

    # Pure-jnp reference.
    h = jnp.einsum("btk,nk->btn", x, weight) + bias
    h = jnp.where(h >= 0.0, h, 0.01 * h)
    h2 = h.reshape(-1, out_dim)
    mean = h2.mean(axis=0)
    var = h2.var(axis=0)
    y_ref = ((h2 - mean) * jax.lax.rsqrt(var + 1e-5) * gamma + beta).reshape(h.shape)

    assert y.shape == (B, T, out_dim)
    assert jnp.allclose(y, y_ref, atol=2e-3, rtol=2e-3)

    # Eval-mode forward (fully fused single kernel).
    y_eval = jax.block_until_ready(
        dense_relu_forward(x, weight, bias, gamma, beta,
                           running_mean, running_var, training=False)
    )
    y_eval_ref = ((h2 - running_mean) * jax.lax.rsqrt(running_var + 1e-5) * gamma
                  + beta).reshape(h.shape)
    assert jnp.allclose(y_eval, y_eval_ref, atol=2e-3, rtol=2e-3)

    print("KERNEL_OK")
</pallas_src>

<mosaic_0001>
module attributes {stable_mosaic.version = 11 : i64} {
  func.func @_dense_relu_kernel(%arg0: i32, %arg1: i32, %arg2: i32, %arg3: memref<16x128xf32, #tpu.memory_space<vmem>>, %arg4: memref<128x128xf32, #tpu.memory_space<vmem>>, %arg5: memref<1x128xf32, #tpu.memory_space<vmem>>, %arg6: memref<1x128xf32, #tpu.memory_space<vmem>>, %arg7: memref<1x128xf32, #tpu.memory_space<vmem>>, %arg8: memref<16x128xf32, #tpu.memory_space<vmem>>, %arg9: memref<16x128xf32, #tpu.memory_space<vmem>>) attributes {dimension_semantics = [#tpu.dimension_semantics<parallel>, #tpu.dimension_semantics<parallel>, #tpu.dimension_semantics<arbitrary>], iteration_bounds = array<i64: 1, 1, 1>, scalar_prefetch = 0 : i64, scratch_operands = 1 : i64, tpu.core_type = #tpu.core_type<tc>, window_params = [{transform_indices = @transform_0, window_bounds = array<i64: 16, 128>}, {transform_indices = @transform_1, window_bounds = array<i64: 128, 128>}, {transform_indices = @transform_2, window_bounds = array<i64: 1, 128>}, {transform_indices = @transform_3, window_bounds = array<i64: 1, 128>}, {transform_indices = @transform_4, window_bounds = array<i64: 1, 128>}, {transform_indices = @transform_5, window_bounds = array<i64: 16, 128>}]} {
    %c0_i32 = arith.constant 0 : i32
    %0 = arith.cmpi eq, %arg2, %c0_i32 : i32
    %1 = arith.extui %0 : i1 to i32
    %c0_i32_0 = arith.constant 0 : i32
    %2 = arith.cmpi ne, %1, %c0_i32_0 : i32
    scf.if %2 {
      %cst_10 = arith.constant 0.000000e+00 : f32
      %12 = vector.broadcast %cst_10 : f32 to vector<16x128xf32>
      %c0_11 = arith.constant 0 : index
      %c0_12 = arith.constant 0 : index
      %13 = vector.load %arg9[%c0_11, %c0_12] : memref<16x128xf32, #tpu.memory_space<vmem>>, vector<16x128xf32>
      tpu.vector_store %arg9[%c0_11, %c0_12], %12 {strides = array<i32>} : memref<16x128xf32, #tpu.memory_space<vmem>>, vector<16x128xf32>,
    } else {
    }
    %c0 = arith.constant 0 : index
    %c0_1 = arith.constant 0 : index
    %3 = vector.load %arg9[%c0, %c0_1] : memref<16x128xf32, #tpu.memory_space<vmem>>, vector<16x128xf32>
    %c0_2 = arith.constant 0 : index
    %c0_3 = arith.constant 0 : index
    %4 = vector.load %arg3[%c0_2, %c0_3] : memref<16x128xf32, #tpu.memory_space<vmem>>, vector<16x128xf32>
    %c0_4 = arith.constant 0 : index
    %c0_5 = arith.constant 0 : index
    %5 = vector.load %arg4[%c0_4, %c0_5] : memref<128x128xf32, #tpu.memory_space<vmem>>, vector<128x128xf32>
    %cst = arith.constant dense<0.000000e+00> : vector<16x128xf32>
    %6 = tpu.matmul %4, %5, %cst {dimension_numbers = #tpu.dot_dimension_numbers<[1], [0], [0], [1], [0, 0, 1, 1], [], []>} : vector<16x128xf32>, vector<128x128xf32>, vector<16x128xf32> -> vector<16x128xf32>
    %7 = arith.addf %3, %6 : vector<16x128xf32>
    %c0_6 = arith.constant 0 : index
    %c0_7 = arith.constant 0 : index
    %8 = vector.load %arg9[%c0_6, %c0_7] : memref<16x128xf32, #tpu.memory_space<vmem>>, vector<16x128xf32>
    tpu.vector_store %arg9[%c0_6, %c0_7], %7 {strides = array<i32>} : memref<16x128xf32, #tpu.memory_space<vmem>>, vector<16x128xf32>,
    %c0_i32_8 = arith.constant 0 : i32
    %9 = arith.cmpi eq, %arg2, %c0_i32_8 : i32
    %10 = arith.extui %9 : i1 to i32
    %c0_i32_9 = arith.constant 0 : i32
    %11 = arith.cmpi ne, %10, %c0_i32_9 : i32
    scf.if %11 {
      %c0_10 = arith.constant 0 : index
      %c0_11 = arith.constant 0 : index
      %12 = vector.load %arg9[%c0_10, %c0_11] : memref<16x128xf32, #tpu.memory_space<vmem>>, vector<16x128xf32>
      %c0_12 = arith.constant 0 : index
      %c0_13 = arith.constant 0 : index
      %13 = vector.load %arg5[%c0_12, %c0_13] : memref<1x128xf32, #tpu.memory_space<vmem>>, vector<1x128xf32>
      %14 = vector.broadcast %13 : vector<1x128xf32> to vector<16x128xf32>
      %15 = arith.addf %12, %14 : vector<16x128xf32>
      %cst_14 = arith.constant 0.000000e+00 : f32
      %16 = vector.broadcast %cst_14 : f32 to vector<16x128xf32>
      %17 = arith.cmpf oge, %15, %16 : vector<16x128xf32>
      %cst_15 = arith.constant 0.00999999977 : f32
      %18 = vector.broadcast %cst_15 : f32 to vector<16x128xf32>
      %19 = arith.mulf %18, %15 : vector<16x128xf32>
      %20 = arith.select %17, %15, %19 : vector<16x128xi1>, vector<16x128xf32>
      %c0_16 = arith.constant 0 : index
      %c0_17 = arith.constant 0 : index
      %21 = vector.load %arg6[%c0_16, %c0_17] : memref<1x128xf32, #tpu.memory_space<vmem>>, vector<1x128xf32>
      %22 = vector.broadcast %21 : vector<1x128xf32> to vector<16x128xf32>
      %23 = arith.mulf %20, %22 : vector<16x128xf32>
      %c0_18 = arith.constant 0 : index
      %c0_19 = arith.constant 0 : index
      %24 = vector.load %arg7[%c0_18, %c0_19] : memref<1x128xf32, #tpu.memory_space<vmem>>, vector<1x128xf32>
      %25 = vector.broadcast %24 : vector<1x128xf32> to vector<16x128xf32>
      %26 = arith.addf %23, %25 : vector<16x128xf32>
      %c0_20 = arith.constant 0 : index
      %c0_21 = arith.constant 0 : index
      %27 = vector.load %arg8[%c0_20, %c0_21] : memref<16x128xf32, #tpu.memory_space<vmem>>, vector<16x128xf32>
      tpu.vector_store %arg8[%c0_20, %c0_21], %26 {strides = array<i32>} : memref<16x128xf32, #tpu.memory_space<vmem>>, vector<16x128xf32>,
    } else {
    }
    return
  }
  func.func @transform_0(%arg0: i32, %arg1: i32, %arg2: i32) -> (i32, i32) {
    %c0_i32 = arith.constant 0 : i32
    return %arg0, %arg2 : i32, i32
  }
  func.func @transform_1(%arg0: i32, %arg1: i32, %arg2: i32) -> (i32, i32) {
    %c0_i32 = arith.constant 0 : i32
    return %arg2, %arg1 : i32, i32
  }
  func.func @transform_2(%arg0: i32, %arg1: i32, %arg2: i32) -> (i32, i32) {
    %c0_i32 = arith.constant 0 : i32
    %c0_i32_0 = arith.constant 0 : i32
    return %c0_i32, %arg1 : i32, i32
  }
  func.func @transform_3(%arg0: i32, %arg1: i32, %arg2: i32) -> (i32, i32) {
    %c0_i32 = arith.constant 0 : i32
    %c0_i32_0 = arith.constant 0 : i32
    return %c0_i32, %arg1 : i32, i32
  }
  func.func @transform_4(%arg0: i32, %arg1: i32, %arg2: i32) -> (i32, i32) {
    %c0_i32 = arith.constant 0 : i32
    %c0_i32_0 = arith.constant 0 : i32
    return %c0_i32, %arg1 : i32, i32
  }
  func.func @transform_5(%arg0: i32, %arg1: i32, %arg2: i32) -> (i32, i32) {
    %c0_i32 = arith.constant 0 : i32
    return %arg0, %arg1 : i32, i32
  }
}

</mosaic_0001>

<llo_original>
// kernel: tpu_custom_call.1
$region0: #{tpu_custom_call.1}
  #allocation0 [shape = 'u32[]', space=smem, size = 0x4, offset = 0x4, fixed_abs, tag = 'smem constant byte address 0x4 - core index']
  #allocation1 [shape = 'u32[144,128]{1,0:T(1,128)}', space=vmem, size = 0x12000, scoped, tag = 'internal scratch']
  #allocation2 [shape = 'f32[16,128]{1,0:T(8,128)}', space=vmem, size = 0x2000, scoped, tag = 'scratch operand']
  %s0 = inlined_call_operand.hbm [shape: f32[16,128], index: 0, kind: input, shape index: {}]
  %s1 = inlined_call_operand.hbm [shape: f32[128,128], index: 1, kind: input, shape index: {}]
  %s2 = inlined_call_operand.vmem [shape: f32[1,128], index: 2, kind: input, shape index: {}]
  %s3 = inlined_call_operand.vmem [shape: f32[1,128], index: 3, kind: input, shape index: {}]
  %s4 = inlined_call_operand.vmem [shape: f32[1,128], index: 4, kind: input, shape index: {}]
  %s5 = inlined_call_operand.hbm [shape: f32[16,128], index: 5, kind: output, shape index: {}]
  %s6 = sld [smem:[#allocation0]]
  $region46: #{tpu_custom_call.1} parent=0
    _
  %s8 = ssub.s32 1, %s6
  %s9 = scalar_select 0, %s8, %s6
  $region1: #{tpu_custom_call.1} parent=0
    #allocation3 [shape = 'u8[8192]{0}', space=vmem, size = 0x2000, scoped, tag = 'input window, operand 0, single buffered']
    #allocation4 [shape = 's32[1]{0}', space=sflag, size = 0x4, scoped, tag = 'scoped memory for tpu_custom_call.1']
    #allocation5 [shape = 's32[1]{0}', space=sflag, size = 0x4, scoped, tag = 'scoped memory for tpu_custom_call.1']
    #allocation6 [shape = 'u8[65536]{0}', space=vmem, size = 0x10000, scoped, tag = 'input window, operand 1, single buffered']
    #allocation7 [shape = 's32[1]{0}', space=sflag, size = 0x4, scoped, tag = 'scoped memory for tpu_custom_call.1']
    #allocation8 [shape = 'u8[8192]{0}', space=vmem, size = 0x2000, scoped, tag = 'output window, operand 0, single buffered']
    %10 = vsyncpa [#allocation4], 0
    %11 = vsyncpa [#allocation7], 0
    %12 = vsyncpa [#allocation5], 0
    // Predicated region
    $region2: #{tpu_custom_call.1} parent=1 // pred_check
      _
    $region3: #{tpu_custom_call.1} parent=1 // pred_check_branch
      %14 = sbr.rel (0) target = $region5
    $region4: #{tpu_custom_call.1} parent=1 // pred_region
      %s16 = ssub.s32 256, 256
      %17 = vsyncadd [#allocation4], %s16
      %s18 = sshll.u32 [#allocation3], 4
      %s19 = int_to_ptr.vmem [resolvable:$true] %s18
      %24 = dma.hbm_to_vmem [thread:$0]  %s0, 256, %s19, [#allocation4], 128, 128, 8
    $region5: #{tpu_custom_call.1} parent=1 // pred_fallthru
      _
    // Predicated region
    $region6: #{tpu_custom_call.1} parent=1 // pred_check
      _
    $region7: #{tpu_custom_call.1} parent=1 // pred_check_branch
      %26 = sbr.rel (0) target = $region9
    $region8: #{tpu_custom_call.1} parent=1 // pred_region
      %s28 = ssub.s32 2048, 2048
      %29 = vsyncadd [#allocation7], %s28
      %s30 = sshll.u32 [#allocation6], 4
      %s31 = int_to_ptr.vmem [resolvable:$true] %s30
      %36 = dma.hbm_to_vmem [thread:$0]  %s1, 2048, %s31, [#allocation7], 128, 128, 8
    $region9: #{tpu_custom_call.1} parent=1 // pred_fallthru
      _
    // Predicated region
    $region10: #{tpu_custom_call.1} parent=1 // pred_check
      _
    $region11: #{tpu_custom_call.1} parent=1 // pred_check_branch
      %38 = sbr.rel (0) target = $region13
    $region12: #{tpu_custom_call.1} parent=1 // pred_region
      _
    $region13: #{tpu_custom_call.1} parent=1 // pred_fallthru
      _
    // Predicated region
    $region14: #{tpu_custom_call.1} parent=1 // pred_check
      _
    $region15: #{tpu_custom_call.1} parent=1 // pred_check_branch
      %40 = sbr.rel (0) target = $region17
    $region16: #{tpu_custom_call.1} parent=1 // pred_region
      _
    $region17: #{tpu_custom_call.1} parent=1 // pred_fallthru
      _
    // Predicated region
    $region18: #{tpu_custom_call.1} parent=1 // pred_check
      _
    $region19: #{tpu_custom_call.1} parent=1 // pred_check_branch
      %42 = sbr.rel (0) target = $region21
    $region20: #{tpu_custom_call.1} parent=1 // pred_region
      _
    $region21: #{tpu_custom_call.1} parent=1 // pred_fallthru
      _
    // Predicated region
    $region22: #{tpu_custom_call.1} parent=1 // pred_check
      _
    $region23: #{tpu_custom_call.1} parent=1 // pred_check_branch
      %44 = sbr.rel (0) target = $region25
    $region24: #{tpu_custom_call.1} parent=1 // pred_region
      %45 = dma.done [#allocation4], 256
    $region25: #{tpu_custom_call.1} parent=1 // pred_fallthru
      _
    // Predicated region
    $region26: #{tpu_custom_call.1} parent=1 // pred_check
      _
    $region27: #{tpu_custom_call.1} parent=1 // pred_check_branch
      %47 = sbr.rel (0) target = $region29
    $region28: #{tpu_custom_call.1} parent=1 // pred_region
      %48 = dma.done [#allocation7], 2048
    $region29: #{tpu_custom_call.1} parent=1 // pred_fallthru
      _
    %p49 = scmp.eq.s32.totalorder 0, 0
    // Predicated region
    $region30: #{tpu_custom_call.1} parent=1 // pred_check
      %p50 = pneg %p49
    $region31: #{tpu_custom_call.1} parent=1 // pred_check_branch
      %52 = sbr.rel (%p50) target = $region33
    $region32: #{tpu_custom_call.1} parent=1 // pred_region
      %53 = vst [vmem:[#allocation2] sm:$0xff] 0.0
      %54 = vst [vmem:[#allocation2 + $0x8] sm:$0xff] 0.0
    $region33: #{tpu_custom_call.1} parent=1 // pred_fallthru
      _
    %v55 = vld [vmem:[#allocation2] sm:$0xff]
    %v56 = vld [vmem:[#allocation2 + $0x8] sm:$0xff]
    %v57 = vld [vmem:[#allocation3] sm:$0xff]
    %v58 = vld [vmem:[#allocation3 + $0x8] sm:$0xff]
    %v59 = vld [vmem:[#allocation6] sm:$0xff]
    %v60 = vld [vmem:[#allocation6 + $0x8] sm:$0xff]
    %v61 = vld [vmem:[#allocation6 + $0x10] sm:$0xff]
    %v62 = vld [vmem:[#allocation6 + $0x18] sm:$0xff]
    %v63 = vld [vmem:[#allocation6 + $0x20] sm:$0xff]
    %v64 = vld [vmem:[#allocation6 + $0x28] sm:$0xff]
    %v65 = vld [vmem:[#allocation6 + $0x30] sm:$0xff]
    %v66 = vld [vmem:[#allocation6 + $0x38] sm:$0xff]
    %v67 = vld [vmem:[#allocation6 + $0x40] sm:$0xff]
    %v68 = vld [vmem:[#allocation6 + $0x48] sm:$0xff]
    %v69 = vld [vmem:[#allocation6 + $0x50] sm:$0xff]
    %v70 = vld [vmem:[#allocation6 + $0x58] sm:$0xff]
    %v71 = vld [vmem:[#allocation6 + $0x60] sm:$0xff]
    %v72 = vld [vmem:[#allocation6 + $0x68] sm:$0xff]
    %v73 = vld [vmem:[#allocation6 + $0x70] sm:$0xff]
    %v74 = vld [vmem:[#allocation6 + $0x78] sm:$0xff]
    %75 = vmatprep.subr.mxu0 0.0
    %76 = vmatpush1.msra.mxu0 %v59
    %77 = vmatprep.subr.mxu0 0.0
    %78 = vmatpush1.msra.mxu0 %v60
    %79 = vmatprep.subr.mxu0 0.0
    %80 = vmatpush1.msra.mxu0 %v61
    %81 = vmatprep.subr.mxu0 0.0
    %82 = vmatpush1.msra.mxu0 %v62
    %83 = vmatprep.subr.mxu0 0.0
    %84 = vmatpush1.msra.mxu0 %v63
    %85 = vmatprep.subr.mxu0 0.0
    %86 = vmatpush1.msra.mxu0 %v64
    %87 = vmatprep.subr.mxu0 0.0
    %88 = vmatpush1.msra.mxu0 %v65
    %89 = vmatprep.subr.mxu0 0.0
    %90 = vmatpush1.msra.mxu0 %v66
    %91 = vmatprep.subr.mxu0 0.0
    %92 = vmatpush1.msra.mxu0 %v67
    %93 = vmatprep.subr.mxu0 0.0
    %94 = vmatpush1.msra.mxu0 %v68
    %95 = vmatprep.subr.mxu0 0.0
    %96 = vmatpush1.msra.mxu0 %v69
    %97 = vmatprep.subr.mxu0 0.0
    %98 = vmatpush1.msra.mxu0 %v70
    %99 = vmatprep.subr.mxu0 0.0
    %100 = vmatpush1.msra.mxu0 %v71
    %101 = vmatprep.subr.mxu0 0.0
    %102 = vmatpush1.msra.mxu0 %v72
    %103 = vmatprep.subr.mxu0 0.0
    %104 = vmatpush1.msra.mxu0 %v73
    %105 = vmatprep.subr.mxu0 0.0
    %106 = vmatpush1.msra.mxu0 %v74
    %107 = vmatprep.subr.mxu0 0.0
    %108 = vmatpush1.msra.mxu0 0.0
    %109 = vmatprep.subr.mxu0 0.0
    %110 = vmatpush1.msra.mxu0 0.0
    %111 = vmatprep.subr.mxu0 0.0
    %112 = vmatpush1.msra.mxu0 0.0
    %113 = vmatprep.subr.mxu0 0.0
    %114 = vmatpush1.msra.mxu0 0.0
    %115 = vmatprep.subr.mxu0 0.0
    %116 = vmatpush1.msra.mxu0 0.0
    %117 = vmatprep.subr.mxu0 0.0
    %118 = vmatpush1.msra.mxu0 0.0
    %119 = vmatprep.subr.mxu0 0.0
    %120 = vmatpush1.msra.mxu0 0.0
    %121 = vmatprep.subr.mxu0 0.0
    %122 = vmatpush1.msra.mxu0 0.0
    %123 = vmatprep.subr.mxu0 0.0
    %124 = vmatpush1.msra.mxu0 0.0
    %125 = vmatprep.subr.mxu0 0.0
    %126 = vmatpush1.msra.mxu0 0.0
    %127 = vmatprep.subr.mxu0 0.0
    %128 = vmatpush1.msra.mxu0 0.0
    %129 = vmatprep.subr.mxu0 0.0
    %130 = vmatpush1.msra.mxu0 0.0
    %131 = vmatprep.subr.mxu0 0.0
    %132 = vmatpush1.msra.mxu0 0.0
    %133 = vmatprep.subr.mxu0 0.0
    %134 = vmatpush1.msra.mxu0 0.0
    %135 = vmatprep.subr.mxu0 0.0
    %136 = vmatpush1.msra.mxu0 0.0
    %137 = vmatprep.subr.mxu0 0.0
    %138 = vmatpush1.msra.mxu0 0.0
    %139 = vmatprep.mubr.f32.mxu0 0.0
    %140 = vmatmul.mubr.f32.gmra.mrb[0].mxu0 %v57
    %v141 = vpop.f32.mrb[0].mxu0
    %v142 = vadd.f32 0.0, %v141
    %v143 = vpop.f32.mrb[0].mxu0
    %144 = vmatprep.mubr.f32.mxu0 0.0
    %145 = vmatmul.mubr.f32.gmra.mrb[0].mxu0 %v58
    %v146 = vpop.f32.mrb[0].mxu0
    %v147 = vadd.f32 0.0, %v146
    %v148 = vpop.f32.mrb[0].mxu0
    %149 = vdwg.mxu0
    %v150 = vadd.f32 %v55, %v142
    %v151 = vadd.f32 %v56, %v147
    %152 = vst [vmem:[#allocation2] sm:$0xff] %v150
    %153 = vst [vmem:[#allocation2 + $0x8] sm:$0xff] %v151
    // Predicated region
    $region34: #{tpu_custom_call.1} parent=1 // pred_check
      %p154 = pneg %p49
    $region35: #{tpu_custom_call.1} parent=1 // pred_check_branch
      %156 = sbr.rel (%p154) target = $region37
    $region36: #{tpu_custom_call.1} parent=1 // pred_region
      %v157 = vld [vmem:[#allocation2] sm:$0xff]
      %v158 = vld [vmem:[#allocation2 + $0x8] sm:$0xff]
      %v159 = vld [vmem:[%s2] sm:$0x1]
      %v161 = vlaneseq
      %v162 = vshrl.u32 %v161, 7
      %v163 = vsub.s32 0, %v162
      %v164 = vrot.slane %v159, %v163
      %v166 = vadd.f32 %v157, %v164
      %v167 = vadd.f32 %v158, %v164
      %vm168 = vcmp.ge.f32.partialorder %v166, 0.0
      %vm169 = vcmp.ge.f32.partialorder %v167, 0.0
      %v170 = vmul.f32 %v166, 0.01
      %v171 = vmul.f32 %v167, 0.01
      %v172 = vsel %vm168, %v166, %v170
      %v173 = vsel %vm169, %v167, %v171
      %v174 = vld [vmem:[%s3] sm:$0x1]
      %v176 = vlaneseq
      %v177 = vshrl.u32 %v176, 7
      %v178 = vsub.s32 0, %v177
      %v179 = vrot.slane %v174, %v178
      %v181 = vmul.f32 %v172, %v179
      %v182 = vmul.f32 %v173, %v179
      %v183 = vld [vmem:[%s4] sm:$0x1]
      %v185 = vlaneseq
      %v186 = vshrl.u32 %v185, 7
      %v187 = vsub.s32 0, %v186
      %v188 = vrot.slane %v183, %v187
      %v190 = vadd.f32 %v181, %v188
      %v191 = vadd.f32 %v182, %v188
      %192 = vst [vmem:[#allocation8] sm:$0xff] %v190
      %193 = vst [vmem:[#allocation8 + $0x8] sm:$0xff] %v191
    $region37: #{tpu_custom_call.1} parent=1 // pred_fallthru
      _
    // Predicated region
    $region38: #{tpu_custom_call.1} parent=1 // pred_check
      _
    $region39: #{tpu_custom_call.1} parent=1 // pred_check_branch
      %195 = sbr.rel (0) target = $region41
    $region40: #{tpu_custom_call.1} parent=1 // pred_region
      %s197 = ssub.s32 256, 256
      %198 = vsyncadd [#allocation5], %s197
      %s199 = sshll.u32 [#allocation8], 4
      %s200 = int_to_ptr.vmem [resolvable:$true] %s199
      %205 = dma.vmem_to_hbm [thread:$0]  %s200, 256, %s5, [#allocation5], 128, 128, 8
    $region41: #{tpu_custom_call.1} parent=1 // pred_fallthru
      _
    // Predicated region
    $region42: #{tpu_custom_call.1} parent=1 // pred_check
      _
    $region43: #{tpu_custom_call.1} parent=1 // pred_check_branch
      %207 = sbr.rel (0) target = $region45
    $region44: #{tpu_custom_call.1} parent=1 // pred_region
      %208 = dma.done [#allocation5], 256
    $region45: #{tpu_custom_call.1} parent=1 // pred_fallthru
      _
    %209 = vsyncpa [#allocation4], 1
    %210 = vsyncpa [#allocation7], 1
    %211 = vsyncpa [#allocation5], 1

</llo_original>
